<compile_context>
chip_gen: v7x
topology: tpu7x:2x2x1
jax: 0.10.0
libtpu: 0.0.40
codegen_flags: <defaults>
</compile_context>

<pallas_src>
import functools

import jax
import jax.numpy as jnp
from jax.experimental import pallas as pl
from jax.experimental.pallas import tpu as pltpu

# ----------------------------- configuration --------------------------------
INPUT_SIZE = 64     # GatedLinearUnit input_size
HIDDEN = 32         # GateAddNorm hidden_size (GLU output / LayerNorm size)
SKIP_SIZE = 16      # skip_size (!= hidden -> TimeDistributedInterpolation path)
LN_EPS = 1e-5

_MAX_TOKEN_TILE = 4096   # obs 1 MiB + skip 0.25 MiB + out 0.5 MiB, x2 buffers ~ 3.6 MiB


# --------------------------- parameter helpers -------------------------------
def interp_matrix(src: int, dst: int) -> jnp.ndarray:
    """Matrix M (src, dst) s.t. x @ M == F.interpolate(x, dst, 'linear', align_corners=True)."""
    if dst == 1:
        pos = jnp.zeros((1,), jnp.float32)
    else:
        pos = jnp.arange(dst, dtype=jnp.float32) * (src - 1) / (dst - 1)
    lo = jnp.floor(pos).astype(jnp.int32)
    hi = jnp.minimum(lo + 1, src - 1)
    frac = pos - lo.astype(jnp.float32)
    cols = jnp.arange(dst)
    m = jnp.zeros((src, dst), jnp.float32)
    m = m.at[lo, cols].add(1.0 - frac)
    m = m.at[hi, cols].add(frac)
    return m


def xavier_uniform(key, shape):
    fan_in, fan_out = shape[-2], shape[-1]
    limit = (6.0 / (fan_in + fan_out)) ** 0.5
    return jax.random.uniform(key, shape, jnp.float32, -limit, limit)


def init_params(key):
    (k_w,) = jax.random.split(key, 1)
    return {
        # GatedLinearUnit: Linear(input_size, 2*hidden), xavier weights, zero bias
        "glu_w": xavier_uniform(k_w, (INPUT_SIZE, 2 * HIDDEN)),
        "glu_b": jnp.zeros((2 * HIDDEN,), jnp.float32),
        # AddNorm resample: linear interpolation skip_size -> hidden
        "interp": interp_matrix(SKIP_SIZE, HIDDEN),
        # AddNorm LayerNorm(hidden)
        "ln_g": jnp.ones((HIDDEN,), jnp.float32),
        "ln_b": jnp.zeros((HIDDEN,), jnp.float32),
    }


# ------------------------------- the kernel ----------------------------------
def gate_add_norm_kernel(obs_ref, skip_ref, glu_w_ref, interp_ref, vec_ref, out_ref):
    """Natural layout: obs (R, IN), skip (R, SKIP) -> out (R, H)."""
    vec = vec_ref[...]                       # (2, 2H) packed f32 params
    glu_b = vec[0:1, :]                      # (1, 2H)
    gamma = vec[1:2, :HIDDEN]                # (1, H)
    beta = vec[1:2, HIDDEN:]                 # (1, H)

    # GatedLinearUnit (dropout=None -> identity). bf16 MXU operands, f32 accumulate.
    x16 = obs_ref[...].astype(jnp.bfloat16)                       # (R, IN)
    h = jnp.dot(x16, glu_w_ref[...],
                preferred_element_type=jnp.float32) + glu_b       # (R, 2H)
    glu = h[:, :HIDDEN] * jax.nn.sigmoid(h[:, HIDDEN:])           # (R, H)

    # AddNorm: resample skip (linear interp SKIP -> H) as a matmul, then add.
    s16 = skip_ref[...].astype(jnp.bfloat16)                      # (R, SKIP)
    y = glu + jnp.dot(s16, interp_ref[...],
                      preferred_element_type=jnp.float32)         # (R, H)

    # LayerNorm(H): single (y - mu) pass reused for variance and output, f32 stats.
    mu = jnp.mean(y, axis=-1, keepdims=True)                      # (R, 1)
    d = y - mu
    var = jnp.mean(d * d, axis=-1, keepdims=True)                 # (R, 1)
    out_ref[...] = (d * jax.lax.rsqrt(var + LN_EPS) * gamma + beta
                    ).astype(out_ref.dtype)


# ------------------------------- wrapper --------------------------------------
@functools.lru_cache(maxsize=None)
def _num_tensorcores() -> int:
    """Best-effort TensorCores-per-chip (2 on v7x, 1 on v5e/v6e)."""
    try:
        dev = jax.devices()[0]
        for attr in ("num_cores", "core_count"):
            v = getattr(dev, attr, None)
            if isinstance(v, int) and v > 0:
                return v
    except Exception:
        pass
    try:
        info = pltpu.get_tpu_info()
        for attr in ("num_cores", "core_count", "tensorcore_count", "num_tensorcores"):
            v = getattr(info, attr, None)
            if isinstance(v, int) and v > 0:
                return v
    except Exception:
        pass
    return 2   # conservative default: keep both TCs busy on megacore parts


def _round_up(x: int, m: int) -> int:
    return ((x + m - 1) // m) * m


def _choose_token_tile(n_tokens: int, n_cores: int) -> int:
    """Largest token tile (sublane axis -> multiple of 8, or the full dim) that
    keeps a core-count-balanced grid and stays under _MAX_TOKEN_TILE."""
    if n_tokens <= 8 or (n_cores <= 1 and n_tokens <= _MAX_TOKEN_TILE):
        return n_tokens          # single step; block == full dim, no divisibility needed
    steps = max(1, -(-n_tokens // _MAX_TOKEN_TILE))
    if n_cores > 1:
        steps = _round_up(max(steps, n_cores), n_cores)   # even split across TCs (v7x)
    return min(n_tokens, _round_up(-(-n_tokens // steps), 8))


@jax.jit
def gate_add_norm_forward(observation, skip, params):
    """observation: (B, T, INPUT_SIZE), skip: (B, T, SKIP_SIZE) -> (B, T, HIDDEN)."""
    B, T, _ = observation.shape
    N = B * T

    # Free reshaped views in the native layout -- no transposes, pads, or casts.
    obs2d = observation.reshape(N, INPUT_SIZE)
    skip2d = skip.reshape(N, SKIP_SIZE)

    glu_w = params["glu_w"].astype(jnp.bfloat16)      # (IN, 2H)  MXU operand
    interp = params["interp"].astype(jnp.bfloat16)    # (SKIP, H) MXU operand
    vec = jnp.stack([params["glu_b"],
                     jnp.concatenate([params["ln_g"], params["ln_b"]])])  # (2, 2H) f32

    tile = _choose_token_tile(N, _num_tensorcores())
    grid = (pl.cdiv(N, tile),)

    out2d = pl.pallas_call(
        gate_add_norm_kernel,
        grid=grid,
        in_specs=[
            pl.BlockSpec((tile, INPUT_SIZE), lambda r: (r, 0)),
            pl.BlockSpec((tile, SKIP_SIZE), lambda r: (r, 0)),
            pl.BlockSpec((INPUT_SIZE, 2 * HIDDEN), lambda r: (0, 0)),
            pl.BlockSpec((SKIP_SIZE, HIDDEN), lambda r: (0, 0)),
            pl.BlockSpec((2, 2 * HIDDEN), lambda r: (0, 0)),
        ],
        out_specs=pl.BlockSpec((tile, HIDDEN), lambda r: (r, 0)),
        out_shape=jax.ShapeDtypeStruct((N, HIDDEN), jnp.float32),
        compiler_params=pltpu.CompilerParams(dimension_semantics=("parallel",)),
    )(obs2d, skip2d, glu_w, interp, vec)

    return out2d.reshape(B, T, HIDDEN)


# --------------------------- pure-JAX reference --------------------------------
def ref_forward(observation, skip, params):
    h = observation @ params["glu_w"] + params["glu_b"]
    glu = h[..., :HIDDEN] * jax.nn.sigmoid(h[..., HIDDEN:])
    sk = skip @ params["interp"]
    y = glu + sk
    mu = y.mean(-1, keepdims=True)
    var = ((y - mu) ** 2).mean(-1, keepdims=True)
    return (y - mu) / jnp.sqrt(var + LN_EPS) * params["ln_g"] + params["ln_b"]


# --------------------------------- main ---------------------------------------
if __name__ == "__main__":
    key = jax.random.PRNGKey(0)
    kp, ko, ks = jax.random.split(key, 3)
    params = init_params(kp)

    # N = 240 tokens -> two 120-token grid steps on 2-TC parts, one step on 1-TC parts.
    B, T = 2, 120
    observation = jax.random.normal(ko, (B, T, INPUT_SIZE), jnp.float32)
    skip = jax.random.normal(ks, (B, T, SKIP_SIZE), jnp.float32)

    out = gate_add_norm_forward(observation, skip, params)
    jax.block_until_ready(out)

    assert out.shape == (B, T, HIDDEN)
    assert bool(jnp.all(jnp.isfinite(out)))

    ref = ref_forward(observation, skip, params)
    max_err = float(jnp.max(jnp.abs(out - ref)))
    # Everything is f32 except the MXU operands (bf16): typical max error ~1e-2;
    # the pure-f32 path agrees to ~1e-6.
    assert max_err < 2.5e-2, f"max abs err vs reference: {max_err}"
    print("KERNEL_OK")
</pallas_src>

<mosaic_0001>
module attributes {stable_mosaic.version = 11 : i64} {
  func.func @gate_add_norm_kernel(%arg0: i32, %arg1: memref<120x64xf32, #tpu.memory_space<vmem>>, %arg2: memref<120x16xf32, #tpu.memory_space<vmem>>, %arg3: memref<64x64xbf16, #tpu.memory_space<vmem>>, %arg4: memref<16x32xbf16, #tpu.memory_space<vmem>>, %arg5: memref<2x64xf32, #tpu.memory_space<vmem>>, %arg6: memref<120x32xf32, #tpu.memory_space<vmem>>) attributes {dimension_semantics = [#tpu.dimension_semantics<parallel>], iteration_bounds = array<i64: 2>, scalar_prefetch = 0 : i64, scratch_operands = 0 : i64, tpu.core_type = #tpu.core_type<tc>, window_params = [{transform_indices = @transform_0, window_bounds = array<i64: 120, 64>}, {transform_indices = @transform_1, window_bounds = array<i64: 120, 16>}, {pipeline_mode = #tpu.pipeline_mode<synchronous>, transform_indices = @transform_2, window_bounds = array<i64: 64, 64>}, {pipeline_mode = #tpu.pipeline_mode<synchronous>, transform_indices = @transform_3, window_bounds = array<i64: 16, 32>}, {pipeline_mode = #tpu.pipeline_mode<synchronous>, transform_indices = @transform_4, window_bounds = array<i64: 2, 64>}, {transform_indices = @transform_5, window_bounds = array<i64: 120, 32>}]} {
    %c0 = arith.constant 0 : index
    %c0_0 = arith.constant 0 : index
    %0 = vector.load %arg5[%c0, %c0_0] : memref<2x64xf32, #tpu.memory_space<vmem>>, vector<2x64xf32>
    %1 = vector.extract_strided_slice %0 {offsets = [0, 0], sizes = [1, 64], strides = [1, 1]} : vector<2x64xf32> to vector<1x64xf32>
    %2 = vector.extract_strided_slice %0 {offsets = [1, 0], sizes = [1, 32], strides = [1, 1]} : vector<2x64xf32> to vector<1x32xf32>
    %3 = vector.extract_strided_slice %0 {offsets = [1, 32], sizes = [1, 32], strides = [1, 1]} : vector<2x64xf32> to vector<1x32xf32>
    %c0_1 = arith.constant 0 : index
    %c0_2 = arith.constant 0 : index
    %4 = vector.load %arg1[%c0_1, %c0_2] : memref<120x64xf32, #tpu.memory_space<vmem>>, vector<120x64xf32>
    %5 = arith.truncf %4 : vector<120x64xf32> to vector<120x64xbf16>
    %c0_3 = arith.constant 0 : index
    %c0_4 = arith.constant 0 : index
    %6 = vector.load %arg3[%c0_3, %c0_4] : memref<64x64xbf16, #tpu.memory_space<vmem>>, vector<64x64xbf16>
    %cst = arith.constant dense<0.000000e+00> : vector<120x64xf32>
    %7 = tpu.matmul %5, %6, %cst {dimension_numbers = #tpu.dot_dimension_numbers<[1], [0], [0], [1], [0, 0, 1, 1], [], []>} : vector<120x64xbf16>, vector<64x64xbf16>, vector<120x64xf32> -> vector<120x64xf32>
    %8 = vector.broadcast %1 : vector<1x64xf32> to vector<120x64xf32>
    %9 = arith.addf %7, %8 : vector<120x64xf32>
    %10 = vector.extract_strided_slice %9 {offsets = [0, 0], sizes = [120, 32], strides = [1, 1]} : vector<120x64xf32> to vector<120x32xf32>
    %11 = vector.extract_strided_slice %9 {offsets = [0, 32], sizes = [120, 32], strides = [1, 1]} : vector<120x64xf32> to vector<120x32xf32>
    %12 = arith.negf %11 : vector<120x32xf32>
    %13 = math.exp %12 : vector<120x32xf32>
    %cst_5 = arith.constant 1.000000e+00 : f32
    %14 = vector.broadcast %cst_5 : f32 to vector<120x32xf32>
    %15 = arith.addf %14, %13 : vector<120x32xf32>
    %16 = arith.divf %14, %15 : vector<120x32xf32>
    %17 = arith.mulf %10, %16 : vector<120x32xf32>
    %c0_6 = arith.constant 0 : index
    %c0_7 = arith.constant 0 : index
    %18 = vector.load %arg2[%c0_6, %c0_7] : memref<120x16xf32, #tpu.memory_space<vmem>>, vector<120x16xf32>
    %19 = arith.truncf %18 : vector<120x16xf32> to vector<120x16xbf16>
    %c0_8 = arith.constant 0 : index
    %c0_9 = arith.constant 0 : index
    %20 = vector.load %arg4[%c0_8, %c0_9] : memref<16x32xbf16, #tpu.memory_space<vmem>>, vector<16x32xbf16>
    %cst_10 = arith.constant dense<0.000000e+00> : vector<120x32xf32>
    %21 = tpu.matmul %19, %20, %cst_10 {dimension_numbers = #tpu.dot_dimension_numbers<[1], [0], [0], [1], [0, 0, 1, 1], [], []>} : vector<120x16xbf16>, vector<16x32xbf16>, vector<120x32xf32> -> vector<120x32xf32>
    %22 = arith.addf %17, %21 : vector<120x32xf32>
    %cst_11 = arith.constant dense<0.000000e+00> : vector<120xf32>
    %23 = vector.multi_reduction <add>, %22, %cst_11 [1] : vector<120x32xf32> to vector<120xf32>
    %24 = vector.shape_cast %23 : vector<120xf32> to vector<120x1xf32>
    %cst_12 = arith.constant 3.200000e+01 : f32
    %25 = vector.broadcast %cst_12 : f32 to vector<120x1xf32>
    %26 = arith.divf %24, %25 : vector<120x1xf32>
    %27 = vector.broadcast %26 : vector<120x1xf32> to vector<120x32xf32>
    %28 = arith.subf %22, %27 : vector<120x32xf32>
    %29 = arith.mulf %28, %28 : vector<120x32xf32>
    %cst_13 = arith.constant dense<0.000000e+00> : vector<120xf32>
    %30 = vector.multi_reduction <add>, %29, %cst_13 [1] : vector<120x32xf32> to vector<120xf32>
    %31 = vector.shape_cast %30 : vector<120xf32> to vector<120x1xf32>
    %cst_14 = arith.constant 3.200000e+01 : f32
    %32 = vector.broadcast %cst_14 : f32 to vector<120x1xf32>
    %33 = arith.divf %31, %32 : vector<120x1xf32>
    %cst_15 = arith.constant 9.99999974E-6 : f32
    %34 = vector.broadcast %cst_15 : f32 to vector<120x1xf32>
    %35 = arith.addf %33, %34 : vector<120x1xf32>
    %36 = math.rsqrt %35 : vector<120x1xf32>
    %37 = vector.broadcast %36 : vector<120x1xf32> to vector<120x32xf32>
    %38 = arith.mulf %28, %37 : vector<120x32xf32>
    %39 = vector.broadcast %2 : vector<1x32xf32> to vector<120x32xf32>
    %40 = arith.mulf %38, %39 : vector<120x32xf32>
    %41 = vector.broadcast %3 : vector<1x32xf32> to vector<120x32xf32>
    %42 = arith.addf %40, %41 : vector<120x32xf32>
    %c0_16 = arith.constant 0 : index
    %c0_17 = arith.constant 0 : index
    %43 = vector.load %arg6[%c0_16, %c0_17] : memref<120x32xf32, #tpu.memory_space<vmem>>, vector<120x32xf32>
    tpu.vector_store %arg6[%c0_16, %c0_17], %42 {strides = array<i32>} : memref<120x32xf32, #tpu.memory_space<vmem>>, vector<120x32xf32>,
    return
  }
  func.func @transform_0(%arg0: i32) -> (i32, i32) {
    %c0_i32 = arith.constant 0 : i32
    %c0_i32_0 = arith.constant 0 : i32
    return %arg0, %c0_i32 : i32, i32
  }
  func.func @transform_1(%arg0: i32) -> (i32, i32) {
    %c0_i32 = arith.constant 0 : i32
    %c0_i32_0 = arith.constant 0 : i32
    return %arg0, %c0_i32 : i32, i32
  }
  func.func @transform_2(%arg0: i32) -> (i32, i32) {
    %c0_i32 = arith.constant 0 : i32
    %c0_i32_0 = arith.constant 0 : i32
    %c0_i32_1 = arith.constant 0 : i32
    return %c0_i32, %c0_i32_0 : i32, i32
  }
  func.func @transform_3(%arg0: i32) -> (i32, i32) {
    %c0_i32 = arith.constant 0 : i32
    %c0_i32_0 = arith.constant 0 : i32
    %c0_i32_1 = arith.constant 0 : i32
    return %c0_i32, %c0_i32_0 : i32, i32
  }
  func.func @transform_4(%arg0: i32) -> (i32, i32) {
    %c0_i32 = arith.constant 0 : i32
    %c0_i32_0 = arith.constant 0 : i32
    %c0_i32_1 = arith.constant 0 : i32
    return %c0_i32, %c0_i32_0 : i32, i32
  }
  func.func @transform_5(%arg0: i32) -> (i32, i32) {
    %c0_i32 = arith.constant 0 : i32
    %c0_i32_0 = arith.constant 0 : i32
    return %arg0, %c0_i32 : i32, i32
  }
}

</mosaic_0001>

<llo_original>
// kernel: gate_add_norm_forward.1
$region0: #{gate_add_norm_forward.1}
  #allocation0 [shape = 'u32[]', space=smem, size = 0x4, offset = 0x4, fixed_abs, tag = 'smem constant byte address 0x4 - core index']
  #allocation1 [shape = 'u32[144,128]{1,0:T(1,128)}', space=vmem, size = 0x12000, scoped, tag = 'internal scratch']
  %s0 = inlined_call_operand.vmem [shape: f32[240,64], index: 0, kind: input, shape index: {}]
  %s1 = inlined_call_operand.vmem [shape: f32[240,16], index: 1, kind: input, shape index: {}]
  %s2 = inlined_call_operand.vmem [shape: bf16[64,64], index: 2, kind: input, shape index: {}]
  %s3 = inlined_call_operand.vmem [shape: bf16[16,32], index: 3, kind: input, shape index: {}]
  %s4 = inlined_call_operand.vmem [shape: f32[2,64], index: 4, kind: input, shape index: {}]
  %s5 = inlined_call_operand.vmem [shape: f32[240,32], index: 5, kind: output, shape index: {}]
  %s6 = sld [smem:[#allocation0]]
  $region53: #{gate_add_norm_forward.1} parent=0
    _
  %s8 = ssub.s32 1, %s6
  %s9 = scalar_select 0, %s8, %s6
  loop: start=0, step=1, limit=4
  $region2: #{gate_add_norm_forward.1} parent=0 // loop_pre_header
    _
  $region3: #{gate_add_norm_forward.1} parent=0 // loop_header
    %s11 = sphi 0, %s15
    %p12 = scmp.ge.s32.totalorder %s11, 4
    %s21 = sphi 0, %s23
    %s24 = sphi 0, %s21
    %s25 = sphi 0, %s24
    %s41 = sphi 0, %s25
    %s47 = sphi 0, %s49
    %s50 = sphi 0, %s47
    %s51 = sphi 0, %s50
    %s67 = sphi 0, %s51
    %s71 = sphi 0, %s71
    %s73 = sphi 0, %s71
    %s74 = sphi 0, %s73
    %s88 = sphi 0, %s74
    %s92 = sphi 0, %s92
    %s94 = sphi 0, %s92
    %s95 = sphi 0, %s94
    %s109 = sphi 0, %s95
    %s113 = sphi 0, %s113
    %s115 = sphi 0, %s113
    %s116 = sphi 0, %s115
    %s130 = sphi 0, %s116
    %s136 = sphi 0, %s138
    %s139 = sphi 0, %s136
    %s140 = sphi 0, %s139
    %s156 = sphi 0, %s140
  $region4: #{gate_add_norm_forward.1} parent=0 // loop_header_branch
    %14 = sbr.rel (%p12) target = $region8
  $region5: #{gate_add_norm_forward.1} parent=0 // loop_body
    %s16 = ssub.s32 %s11, 1
    %s17 = ssub.s32 %s11, 2
    %s18 = sadd.s32 %s11, 1
    %s19 = ssub.s32 %s11, %s18
    %p20 = scmp.eq.s32.totalorder %s19, 0
    %s22 = sadd.s32 %s21, 1
    %s23 = scalar_select %p20, %s21, %s22
    %p26 = pneg %p20
    %p27 = scmp.eq.s32.totalorder %s11, 1
    %p28 = por %p26, %p27
    %p29 = scmp.ne.s32.totalorder %s21, %s24
    %p30 = scmp.eq.s32.totalorder %s11, 0
    %p31 = por %p29, %p30
    %p32 = scmp.ne.s32.totalorder %s21, %s24
    %p33 = scmp.eq.s32.totalorder %s16, 1
    %p34 = por %p32, %p33
    %p35 = scmp.ne.s32.totalorder %s24, %s25
    %p36 = scmp.eq.s32.totalorder %s16, 0
    %p37 = por %p35, %p36
    %p38 = scmp.ne.s32.totalorder %s24, %s25
    %p39 = scmp.eq.s32.totalorder %s17, 1
    %p40 = por %p38, %p39
    %p42 = scmp.ne.s32.totalorder %s25, %s41
    %p43 = scmp.eq.s32.totalorder %s17, 0
    %p44 = por %p42, %p43
    %s45 = ssub.s32 %s11, %s18
    %p46 = scmp.eq.s32.totalorder %s45, 0
    %s48 = sadd.s32 %s47, 1
    %s49 = scalar_select %p46, %s47, %s48
    %p52 = pneg %p46
    %p53 = scmp.eq.s32.totalorder %s11, 1
    %p54 = por %p52, %p53
    %p55 = scmp.ne.s32.totalorder %s47, %s50
    %p56 = scmp.eq.s32.totalorder %s11, 0
    %p57 = por %p55, %p56
    %p58 = scmp.ne.s32.totalorder %s47, %s50
    %p59 = scmp.eq.s32.totalorder %s16, 1
    %p60 = por %p58, %p59
    %p61 = scmp.ne.s32.totalorder %s50, %s51
    %p62 = scmp.eq.s32.totalorder %s16, 0
    %p63 = por %p61, %p62
    %p64 = scmp.ne.s32.totalorder %s50, %s51
    %p65 = scmp.eq.s32.totalorder %s17, 1
    %p66 = por %p64, %p65
    %p68 = scmp.ne.s32.totalorder %s51, %s67
    %p69 = scmp.eq.s32.totalorder %s17, 0
    %p70 = por %p68, %p69
    %s72 = sadd.s32 %s71, 1
    %p75 = scmp.eq.s32.totalorder %s11, 1
    %p76 = scmp.ne.s32.totalorder %s71, %s73
    %p77 = scmp.eq.s32.totalorder %s11, 0
    %p78 = por %p76, %p77
    %p79 = scmp.ne.s32.totalorder %s71, %s73
    %p80 = scmp.eq.s32.totalorder %s16, 1
    %p81 = por %p79, %p80
    %p82 = scmp.ne.s32.totalorder %s73, %s74
    %p83 = scmp.eq.s32.totalorder %s16, 0
    %p84 = por %p82, %p83
    %p85 = scmp.ne.s32.totalorder %s73, %s74
    %p86 = scmp.eq.s32.totalorder %s17, 1
    %p87 = por %p85, %p86
    %p89 = scmp.ne.s32.totalorder %s74, %s88
    %p90 = scmp.eq.s32.totalorder %s17, 0
    %p91 = por %p89, %p90
    %s93 = sadd.s32 %s92, 1
    %p96 = scmp.eq.s32.totalorder %s11, 1
    %p97 = scmp.ne.s32.totalorder %s92, %s94
    %p98 = scmp.eq.s32.totalorder %s11, 0
    %p99 = por %p97, %p98
    %p100 = scmp.ne.s32.totalorder %s92, %s94
    %p101 = scmp.eq.s32.totalorder %s16, 1
    %p102 = por %p100, %p101
    %p103 = scmp.ne.s32.totalorder %s94, %s95
    %p104 = scmp.eq.s32.totalorder %s16, 0
    %p105 = por %p103, %p104
    %p106 = scmp.ne.s32.totalorder %s94, %s95
    %p107 = scmp.eq.s32.totalorder %s17, 1
    %p108 = por %p106, %p107
    %p110 = scmp.ne.s32.totalorder %s95, %s109
    %p111 = scmp.eq.s32.totalorder %s17, 0
    %p112 = por %p110, %p111
    %s114 = sadd.s32 %s113, 1
    %p117 = scmp.eq.s32.totalorder %s11, 1
    %p118 = scmp.ne.s32.totalorder %s113, %s115
    %p119 = scmp.eq.s32.totalorder %s11, 0
    %p120 = por %p118, %p119
    %p121 = scmp.ne.s32.totalorder %s113, %s115
    %p122 = scmp.eq.s32.totalorder %s16, 1
    %p123 = por %p121, %p122
    %p124 = scmp.ne.s32.totalorder %s115, %s116
    %p125 = scmp.eq.s32.totalorder %s16, 0
    %p126 = por %p124, %p125
    %p127 = scmp.ne.s32.totalorder %s115, %s116
    %p128 = scmp.eq.s32.totalorder %s17, 1
    %p129 = por %p127, %p128
    %p131 = scmp.ne.s32.totalorder %s116, %s130
    %p132 = scmp.eq.s32.totalorder %s17, 0
    %p133 = por %p131, %p132
    %s134 = ssub.s32 %s11, %s18
    %p135 = scmp.eq.s32.totalorder %s134, 0
    %s137 = sadd.s32 %s136, 1
    %s138 = scalar_select %p135, %s136, %s137
    %p141 = pneg %p135
    %p142 = scmp.eq.s32.totalorder %s11, 1
    %p143 = por %p141, %p142
    %p144 = scmp.ne.s32.totalorder %s136, %s139
    %p145 = scmp.eq.s32.totalorder %s11, 0
    %p146 = por %p144, %p145
    %p147 = scmp.ne.s32.totalorder %s136, %s139
    %p148 = scmp.eq.s32.totalorder %s16, 1
    %p149 = por %p147, %p148
    %p150 = scmp.ne.s32.totalorder %s139, %s140
    %p151 = scmp.eq.s32.totalorder %s16, 0
    %p152 = por %p150, %p151
    %p153 = scmp.ne.s32.totalorder %s139, %s140
    %p154 = scmp.eq.s32.totalorder %s17, 1
    %p155 = por %p153, %p154
    %p157 = scmp.ne.s32.totalorder %s140, %s156
    %p158 = scmp.eq.s32.totalorder %s17, 0
    %p159 = por %p157, %p158
    %p160 = scmp.le.s32.totalorder 1, %s11
    %p161 = scmp.lt.s32.totalorder %s11, 3
    %p162 = pnand %p160, %p161
    %p163 = pneg %p162
    // Predicated region
    $region9: #{gate_add_norm_forward.1} parent=5 // pred_check
      _
    $region10: #{gate_add_norm_forward.1} parent=5 // pred_check_branch
      %165 = sbr.rel (%p162) target = $region12
    $region11: #{gate_add_norm_forward.1} parent=5 // pred_region
      %s166 = ssub.s32 %s11, 1
      // Predicated region
      $region13: #{gate_add_norm_forward.1} parent=11 // pred_check
        %p167 = pneg %p84
      $region14: #{gate_add_norm_forward.1} parent=11 // pred_check_branch
        %169 = sbr.rel (%p167) target = $region16
      $region15: #{gate_add_norm_forward.1} parent=11 // pred_region
        _
      $region16: #{gate_add_norm_forward.1} parent=11 // pred_fallthru
        _
      // Predicated region
      $region17: #{gate_add_norm_forward.1} parent=11 // pred_check
        %p170 = pneg %p105
      $region18: #{gate_add_norm_forward.1} parent=11 // pred_check_branch
        %172 = sbr.rel (%p170) target = $region20
      $region19: #{gate_add_norm_forward.1} parent=11 // pred_region
        _
      $region20: #{gate_add_norm_forward.1} parent=11 // pred_fallthru
        _
      // Predicated region
      $region21: #{gate_add_norm_forward.1} parent=11 // pred_check
        %p173 = pneg %p126
      $region22: #{gate_add_norm_forward.1} parent=11 // pred_check_branch
        %175 = sbr.rel (%p173) target = $region24
      $region23: #{gate_add_norm_forward.1} parent=11 // pred_region
        _
      $region24: #{gate_add_norm_forward.1} parent=11 // pred_fallthru
        _
    $region12: #{gate_add_norm_forward.1} parent=5 // pred_fallthru
      _
    %p176 = scmp.lt.s32.totalorder %s11, 2
    // Predicated region
    $region25: #{gate_add_norm_forward.1} parent=5 // pred_check
      %p177 = pneg %p176
    $region26: #{gate_add_norm_forward.1} parent=5 // pred_check_branch
      %179 = sbr.rel (%p177) target = $region28
    $region27: #{gate_add_norm_forward.1} parent=5 // pred_region
      // Predicated region
      $region29: #{gate_add_norm_forward.1} parent=27 // pred_check
        %p180 = pneg %p31
      $region30: #{gate_add_norm_forward.1} parent=27 // pred_check_branch
        %182 = sbr.rel (%p180) target = $region32
      $region31: #{gate_add_norm_forward.1} parent=27 // pred_region
        %s183 = smul.u32 15, %s11
        %p184 = scmp.lt.s32.totalorder %s183, 29
        %s185 = scalar_select %p184, %s183, 29
        %s186 = smul.addr %s185, 8
        %s187 = scalar_lea.vmem %s0, %s186
        %s188 = smul.u32 15, %s11
      $region32: #{gate_add_norm_forward.1} parent=27 // pred_fallthru
        _
      // Predicated region
      $region33: #{gate_add_norm_forward.1} parent=27 // pred_check
        %p189 = pneg %p57
      $region34: #{gate_add_norm_forward.1} parent=27 // pred_check_branch
        %191 = sbr.rel (%p189) target = $region36
      $region35: #{gate_add_norm_forward.1} parent=27 // pred_region
        %s192 = smul.u32 15, %s11
        %p193 = scmp.lt.s32.totalorder %s192, 29
        %s194 = scalar_select %p193, %s192, 29
        %s195 = smul.addr %s194, 8
        %s196 = scalar_lea.vmem %s1, %s195
        %s197 = smul.u32 15, %s11
      $region36: #{gate_add_norm_forward.1} parent=27 // pred_fallthru
        _
    $region28: #{gate_add_norm_forward.1} parent=5 // pred_fallthru
      _
    %p198 = scmp.le.s32.totalorder 1, %s11
    %p199 = scmp.lt.s32.totalorder %s11, 3
    %p200 = pnand %p198, %p199
    %p201 = pneg %p200
    // Predicated region
    $region37: #{gate_add_norm_forward.1} parent=5 // pred_check
      _
    $region38: #{gate_add_norm_forward.1} parent=5 // pred_check_branch
      %203 = sbr.rel (%p200) target = $region40
    $region39: #{gate_add_norm_forward.1} parent=5 // pred_region
      %s204 = ssub.s32 %s11, 1
      %s205 = smul.u32 15, %s16
      %p206 = scmp.lt.s32.totalorder %s205, 29
      %s207 = scalar_select %p206, %s205, 29
      %s208 = smul.addr %s207, 8
      %s209 = scalar_lea.vmem %s0, %s208
      %p210 = pneg %p37
      %p211 = pneg %p34
      %s212 = smul.u32 15, %s16
      %p213 = scmp.lt.s32.totalorder %s212, 29
      %s214 = scalar_select %p213, %s212, 29
      %s215 = smul.addr %s214, 8
      %s216 = scalar_lea.vmem %s1, %s215
      %p217 = pneg %p63
      %p218 = pneg %p60
      %p219 = pneg %p84
      %p220 = pneg %p81
      %p221 = pneg %p105
      %p222 = pneg %p102
      %p223 = pneg %p126
      %p224 = pneg %p123
      %p225 = pneg %p152
      %p226 = pneg %p149
      %s227 = smul.u32 15, %s16
      %p228 = scmp.lt.s32.totalorder %s227, 29
      %s229 = scalar_select %p228, %s227, 29
      %s230 = smul.addr %s229, 8
      %s231 = scalar_lea.vmem %s5, %s230
      %s232 = smul.u32 15, %s16
      %p233 = scmp.lt.s32.totalorder %s232, 29
      %s234 = scalar_select %p233, %s232, 29
      %s235 = smul.addr %s234, 8
      %s236 = scalar_lea.vmem %s0, %s235
      %s237 = smul.u32 15, %s16
      %s238 = smul.u32 15, %s16
      %p239 = scmp.lt.s32.totalorder %s238, 29
      %s240 = scalar_select %p239, %s238, 29
      %s241 = smul.addr %s240, 8
      %s242 = scalar_lea.vmem %s1, %s241
      %s243 = smul.u32 15, %s16
      %s244 = smul.u32 15, %s16
      %p245 = scmp.lt.s32.totalorder %s244, 29
      %s246 = scalar_select %p245, %s244, 29
      %s247 = smul.addr %s246, 8
      %s248 = scalar_lea.vmem %s5, %s247
      %s249 = smul.u32 15, %s16
      %v251 = vld [vmem:[%s4] sm:$0x3]
      %v252 = vld [vmem:[%s236] sm:$0xff]
      %v253 = vld [vmem:[%s236 + $0x8] sm:$0xff]
      %v254 = vld [vmem:[%s236 + $0x10] sm:$0xff]
      %v255 = vld [vmem:[%s236 + $0x18] sm:$0xff]
      %v256 = vld [vmem:[%s236 + $0x20] sm:$0xff]
      %v257 = vld [vmem:[%s236 + $0x28] sm:$0xff]
      %v258 = vld [vmem:[%s236 + $0x30] sm:$0xff]
      %v259 = vld [vmem:[%s236 + $0x38] sm:$0xff]
      %v260 = vld [vmem:[%s236 + $0x40] sm:$0xff]
      %v261 = vld [vmem:[%s236 + $0x48] sm:$0xff]
      %v262 = vld [vmem:[%s236 + $0x50] sm:$0xff]
      %v263 = vld [vmem:[%s236 + $0x58] sm:$0xff]
      %v264 = vld [vmem:[%s236 + $0x60] sm:$0xff]
      %v265 = vld [vmem:[%s236 + $0x68] sm:$0xff]
      %v266 = vld [vmem:[%s236 + $0x70] sm:$0xff]
      %v267 = vpack.c.bf16 %v253, %v252
      %v268 = vpack.c.bf16 %v255, %v254
      %v269 = vpack.c.bf16 %v257, %v256
      %v270 = vpack.c.bf16 %v259, %v258
      %v271 = vpack.c.bf16 %v261, %v260
      %v272 = vpack.c.bf16 %v263, %v262
      %v273 = vpack.c.bf16 %v265, %v264
      %v274 = vpack.c.bf16 %v266, %v266
      %v275 = vld [vmem:[%s2] sm:$0xf]
      %v276 = vld [vmem:[%s2 + $0x4] sm:$0xf]
      %v277 = vld [vmem:[%s2 + $0x8] sm:$0xf]
      %v278 = vld [vmem:[%s2 + $0xc] sm:$0xf]
      %v279 = vld [vmem:[%s2 + $0x10] sm:$0xf]
      %v280 = vld [vmem:[%s2 + $0x14] sm:$0xf]
      %v281 = vld [vmem:[%s2 + $0x18] sm:$0xf]
      %v282 = vld [vmem:[%s2 + $0x1c] sm:$0xf]
      %v283 = vlaneseq
      %v284 = vshrl.u32 %v283, 7
      %v285 = vsub.s32 0, %v284
      %v286 = vrot.slane %v251, %v285
      %v295 = vunpack.c.l.b16 %v275
      %v296 = vunpack.c.l.b16 %v276
      %v297 = vunpack.c.l.b16 %v277
      %v298 = vunpack.c.l.b16 %v278
      %v299 = vunpack.c.l.b16 %v279
      %v300 = vunpack.c.l.b16 %v280
      %v301 = vunpack.c.l.b16 %v281
      %v302 = vunpack.c.l.b16 %v282
      %v303 = vpack.c.b16 %v296, %v295
      %v304 = vpack.c.b16 %v298, %v297
      %v305 = vpack.c.b16 %v300, %v299
      %v306 = vpack.c.b16 %v302, %v301
      %vm311 = vcmask 523264
      %v313 = vsel %vm311, %v267, 0
      %v316 = vsel %vm311, %v268, 0
      %v319 = vsel %vm311, %v269, 0
      %v322 = vsel %vm311, %v270, 0
      %v325 = vsel %vm311, %v271, 0
      %v328 = vsel %vm311, %v272, 0
      %v331 = vsel %vm311, %v273, 0
      %v334 = vsel %vm311, %v274, 0
      %336 = vmatprep.subr.bf16.mxu0 0
      %337 = vmatpush1.bf16.msra.mxu0 %v303
      %338 = vmatprep.subr.bf16.mxu0 0
      %339 = vmatpush1.bf16.msra.mxu0 %v304
      %340 = vmatprep.subr.bf16.mxu0 0
      %341 = vmatpush1.bf16.msra.mxu0 %v305
      %342 = vmatprep.subr.bf16.mxu0 0
      %343 = vmatpush1.bf16.msra.mxu0 %v306
      %344 = vmatprep.subr.bf16.mxu0 0
      %345 = vmatpush1.bf16.msra.mxu0 0
      %346 = vmatprep.subr.bf16.mxu0 0
      %347 = vmatpush1.bf16.msra.mxu0 0
      %348 = vmatprep.subr.bf16.mxu0 0
      %349 = vmatpush1.bf16.msra.mxu0 0
      %350 = vmatprep.subr.bf16.mxu0 0
      %351 = vmatpush1.bf16.msra.mxu0 0
      %352 = vmatprep.subr.bf16.mxu0 0
      %353 = vmatpush1.bf16.msra.mxu0 0
      %354 = vmatprep.subr.bf16.mxu0 0
      %355 = vmatpush1.bf16.msra.mxu0 0
      %356 = vmatprep.subr.bf16.mxu0 0
      %357 = vmatpush1.bf16.msra.mxu0 0
      %358 = vmatprep.subr.bf16.mxu0 0
      %359 = vmatpush1.bf16.msra.mxu0 0
      %360 = vmatprep.subr.bf16.mxu0 0
      %361 = vmatpush1.bf16.msra.mxu0 0
      %362 = vmatprep.subr.bf16.mxu0 0
      %363 = vmatpush1.bf16.msra.mxu0 0
      %364 = vmatprep.subr.bf16.mxu0 0
      %365 = vmatpush1.bf16.msra.mxu0 0
      %366 = vmatprep.subr.bf16.mxu0 0
      %367 = vmatpush1.bf16.msra.mxu0 0
      %368 = vmatprep.mubr.bf16.mxu0 0
      %369 = vmatmul.mubr.bf16.gmra.mrb[0].mxu0 %v313
      %v370 = vpop.f32.mrb[0].mxu0
      %v371 = vadd.f32 %v286, %v370
      %v372 = vpop.f32.mrb[0].mxu0
      %v373 = vpop.f32.mrb[0].mxu0
      %v374 = vadd.f32 %v286, %v373
      %v375 = vpop.f32.mrb[0].mxu0
      %376 = vmatprep.mubr.bf16.mxu0 0
      %377 = vmatmul.mubr.bf16.gmra.mrb[0].mxu0 %v316
      %v378 = vpop.f32.mrb[0].mxu0
      %v379 = vadd.f32 %v286, %v378
      %v380 = vpop.f32.mrb[0].mxu0
      %v381 = vpop.f32.mrb[0].mxu0
      %v382 = vadd.f32 %v286, %v381
      %v383 = vpop.f32.mrb[0].mxu0
      %384 = vmatprep.mubr.bf16.mxu0 0
      %385 = vmatmul.mubr.bf16.gmra.mrb[0].mxu0 %v319
      %v386 = vpop.f32.mrb[0].mxu0
      %v387 = vadd.f32 %v286, %v386
      %v388 = vpop.f32.mrb[0].mxu0
      %v389 = vpop.f32.mrb[0].mxu0
      %v390 = vadd.f32 %v286, %v389
      %v391 = vpop.f32.mrb[0].mxu0
      %392 = vmatprep.mubr.bf16.mxu0 0
      %393 = vmatmul.mubr.bf16.gmra.mrb[0].mxu0 %v322
      %v394 = vpop.f32.mrb[0].mxu0
      %v395 = vadd.f32 %v286, %v394
      %v396 = vpop.f32.mrb[0].mxu0
      %v397 = vpop.f32.mrb[0].mxu0
      %v398 = vadd.f32 %v286, %v397
      %v399 = vpop.f32.mrb[0].mxu0
      %400 = vmatprep.mubr.bf16.mxu0 0
      %401 = vmatmul.mubr.bf16.gmra.mrb[0].mxu0 %v325
      %v402 = vpop.f32.mrb[0].mxu0
      %v403 = vadd.f32 %v286, %v402
      %v404 = vpop.f32.mrb[0].mxu0
      %v405 = vpop.f32.mrb[0].mxu0
      %v406 = vadd.f32 %v286, %v405
      %v407 = vpop.f32.mrb[0].mxu0
      %408 = vmatprep.mubr.bf16.mxu0 0
      %409 = vmatmul.mubr.bf16.gmra.mrb[0].mxu0 %v328
      %v410 = vpop.f32.mrb[0].mxu0
      %v411 = vadd.f32 %v286, %v410
      %v412 = vpop.f32.mrb[0].mxu0
      %v413 = vpop.f32.mrb[0].mxu0
      %v414 = vadd.f32 %v286, %v413
      %v415 = vpop.f32.mrb[0].mxu0
      %416 = vmatprep.mubr.bf16.mxu0 0
      %417 = vmatmul.mubr.bf16.gmra.mrb[0].mxu0 %v331
      %v418 = vpop.f32.mrb[0].mxu0
      %v419 = vadd.f32 %v286, %v418
      %v420 = vpop.f32.mrb[0].mxu0
      %v421 = vpop.f32.mrb[0].mxu0
      %v422 = vadd.f32 %v286, %v421
      %v423 = vpop.f32.mrb[0].mxu0
      %424 = vmatprep.mubr.bf16.mxu0 0
      %425 = vmatmul.mubr.bf16.gmra.mrb[0].mxu0 %v334
      %v426 = vpop.f32.mrb[0].mxu0
      %v427 = vadd.f32 %v286, %v426
      %v428 = vpop.f32.mrb[0].mxu0
      %v429 = vpop.f32.mrb[0].mxu0
      %v430 = vpop.f32.mrb[0].mxu0
      %431 = vdwg.mxu0
      %v432 = vxor.u32 %v371, 2147483648
      %v433 = vxor.u32 %v374, 2147483648
      %v434 = vxor.u32 %v379, 2147483648
      %v435 = vxor.u32 %v382, 2147483648
      %v436 = vxor.u32 %v387, 2147483648
      %v437 = vxor.u32 %v390, 2147483648
      %v438 = vxor.u32 %v395, 2147483648
      %v439 = vxor.u32 %v398, 2147483648
      %v440 = vxor.u32 %v403, 2147483648
      %v441 = vxor.u32 %v406, 2147483648
      %v442 = vxor.u32 %v411, 2147483648
      %v443 = vxor.u32 %v414, 2147483648
      %v444 = vxor.u32 %v419, 2147483648
      %v445 = vxor.u32 %v422, 2147483648
      %v446 = vxor.u32 %v427, 2147483648
      %v447 = vmul.f32 %v432, 1.442695
      %v448 = vpow.pop %v447
      %v449 = vmul.f32 %v433, 1.442695
      %v450 = vpow.pop %v449
      %v451 = vmul.f32 %v434, 1.442695
      %v452 = vpow.pop %v451
      %v453 = vmul.f32 %v435, 1.442695
      %v454 = vpow.pop %v453
      %v455 = vmul.f32 %v436, 1.442695
      %v456 = vpow.pop %v455
      %v457 = vmul.f32 %v437, 1.442695
      %v458 = vpow.pop %v457
      %v459 = vmul.f32 %v438, 1.442695
      %v460 = vpow.pop %v459
      %v461 = vmul.f32 %v439, 1.442695
      %v462 = vpow.pop %v461
      %v463 = vmul.f32 %v440, 1.442695
      %v464 = vpow.pop %v463
      %v465 = vmul.f32 %v441, 1.442695
      %v466 = vpow.pop %v465
      %v467 = vmul.f32 %v442, 1.442695
      %v468 = vpow.pop %v467
      %v469 = vmul.f32 %v443, 1.442695
      %v470 = vpow.pop %v469
      %v471 = vmul.f32 %v444, 1.442695
      %v472 = vpow.pop %v471
      %v473 = vmul.f32 %v445, 1.442695
      %v474 = vpow.pop %v473
      %v475 = vmul.f32 %v446, 1.442695
      %v476 = vpow.pop %v475
      %v477 = vadd.f32 %v448, 1.0
      %v478 = vadd.f32 %v450, 1.0
      %v479 = vadd.f32 %v452, 1.0
      %v480 = vadd.f32 %v454, 1.0
      %v481 = vadd.f32 %v456, 1.0
      %v482 = vadd.f32 %v458, 1.0
      %v483 = vadd.f32 %v460, 1.0
      %v484 = vadd.f32 %v462, 1.0
      %v485 = vadd.f32 %v464, 1.0
      %v486 = vadd.f32 %v466, 1.0
      %v487 = vadd.f32 %v468, 1.0
      %v488 = vadd.f32 %v470, 1.0
      %v489 = vadd.f32 %v472, 1.0
      %v490 = vadd.f32 %v474, 1.0
      %v491 = vadd.f32 %v476, 1.0
      %v492 = vrcp.pop %v477
      %v493 = vmul.f32 1.0, %v492
      %v494 = vrcp.pop %v478
      %v495 = vmul.f32 1.0, %v494
      %v496 = vrcp.pop %v479
      %v497 = vmul.f32 1.0, %v496
      %v498 = vrcp.pop %v480
      %v499 = vmul.f32 1.0, %v498
      %v500 = vrcp.pop %v481
      %v501 = vmul.f32 1.0, %v500
      %v502 = vrcp.pop %v482
      %v503 = vmul.f32 1.0, %v502
      %v504 = vrcp.pop %v483
      %v505 = vmul.f32 1.0, %v504
      %v506 = vrcp.pop %v484
      %v507 = vmul.f32 1.0, %v506
      %v508 = vrcp.pop %v485
      %v509 = vmul.f32 1.0, %v508
      %v510 = vrcp.pop %v486
      %v511 = vmul.f32 1.0, %v510
      %v512 = vrcp.pop %v487
      %v513 = vmul.f32 1.0, %v512
      %v514 = vrcp.pop %v488
      %v515 = vmul.f32 1.0, %v514
      %v516 = vrcp.pop %v489
      %v517 = vmul.f32 1.0, %v516
      %v518 = vrcp.pop %v490
      %v519 = vmul.f32 1.0, %v518
      %v520 = vrcp.pop %v491
      %v521 = vmul.f32 1.0, %v520
      %537 = vrot.lane.b32.xlu0 %v493, 96
      %v538 = vpop.permute.xlu0 %537
      %539 = vrot.lane.b32.xlu0 %v495, 96
      %v540 = vpop.permute.xlu0 %539
      %541 = vrot.lane.b32.xlu0 %v497, 96
      %v542 = vpop.permute.xlu0 %541
      %543 = vrot.lane.b32.xlu0 %v499, 96
      %v544 = vpop.permute.xlu0 %543
      %545 = vrot.lane.b32.xlu0 %v501, 96
      %v546 = vpop.permute.xlu0 %545
      %547 = vrot.lane.b32.xlu0 %v503, 96
      %v548 = vpop.permute.xlu0 %547
      %549 = vrot.lane.b32.xlu0 %v505, 96
      %v550 = vpop.permute.xlu0 %549
      %551 = vrot.lane.b32.xlu0 %v507, 96
      %v552 = vpop.permute.xlu0 %551
      %553 = vrot.lane.b32.xlu0 %v509, 96
      %v554 = vpop.permute.xlu0 %553
      %555 = vrot.lane.b32.xlu0 %v511, 96
      %v556 = vpop.permute.xlu0 %555
      %557 = vrot.lane.b32.xlu0 %v513, 96
      %v558 = vpop.permute.xlu0 %557
      %559 = vrot.lane.b32.xlu0 %v515, 96
      %v560 = vpop.permute.xlu0 %559
      %561 = vrot.lane.b32.xlu0 %v517, 96
      %v562 = vpop.permute.xlu0 %561
      %563 = vrot.lane.b32.xlu0 %v519, 96
      %v564 = vpop.permute.xlu0 %563
      %565 = vrot.lane.b32.xlu0 %v521, 96
      %v566 = vpop.permute.xlu0 %565
      %v582 = vmul.f32 %v371, %v538
      %v583 = vmul.f32 %v374, %v540
      %v584 = vmul.f32 %v379, %v542
      %v585 = vmul.f32 %v382, %v544
      %v586 = vmul.f32 %v387, %v546
      %v587 = vmul.f32 %v390, %v548
      %v588 = vmul.f32 %v395, %v550
      %v589 = vmul.f32 %v398, %v552
      %v590 = vmul.f32 %v403, %v554
      %v591 = vmul.f32 %v406, %v556
      %v592 = vmul.f32 %v411, %v558
      %v593 = vmul.f32 %v414, %v560
      %v594 = vmul.f32 %v419, %v562
      %v595 = vmul.f32 %v422, %v564
      %v596 = vmul.f32 %v427, %v566
      %v597 = vld [vmem:[%s242] sm:$0xff]
      %v598 = vld [vmem:[%s242 + $0x8] sm:$0xff]
      %v599 = vld [vmem:[%s242 + $0x10] sm:$0xff]
      %v600 = vld [vmem:[%s242 + $0x18] sm:$0xff]
      %v601 = vld [vmem:[%s242 + $0x20] sm:$0xff]
      %v602 = vld [vmem:[%s242 + $0x28] sm:$0xff]
      %v603 = vld [vmem:[%s242 + $0x30] sm:$0xff]
      %v604 = vld [vmem:[%s242 + $0x38] sm:$0xff]
      %v605 = vld [vmem:[%s242 + $0x40] sm:$0xff]
      %v606 = vld [vmem:[%s242 + $0x48] sm:$0xff]
      %v607 = vld [vmem:[%s242 + $0x50] sm:$0xff]
      %v608 = vld [vmem:[%s242 + $0x58] sm:$0xff]
      %v609 = vld [vmem:[%s242 + $0x60] sm:$0xff]
      %v610 = vld [vmem:[%s242 + $0x68] sm:$0xff]
      %v611 = vld [vmem:[%s242 + $0x70] sm:$0xff]
      %v612 = vpack.c.bf16 %v598, %v597
      %v613 = vpack.c.bf16 %v600, %v599
      %v614 = vpack.c.bf16 %v602, %v601
      %v615 = vpack.c.bf16 %v604, %v603
      %v616 = vpack.c.bf16 %v606, %v605
      %v617 = vpack.c.bf16 %v608, %v607
      %v618 = vpack.c.bf16 %v610, %v609
      %v619 = vpack.c.bf16 %v611, %v611
      %v620 = vld [vmem:[%s3] sm:$0xf]
      %v621 = vld [vmem:[%s3 + $0x4] sm:$0xf]
      %v624 = vunpack.c.l.b16 %v620
      %v625 = vunpack.c.l.b16 %v621
      %v626 = vpack.c.b16 %v625, %v624
      %vm628 = vcmask 130048
      %v630 = vsel %vm628, %v612, 0
      %v633 = vsel %vm628, %v613, 0
      %v636 = vsel %vm628, %v614, 0
      %v639 = vsel %vm628, %v615, 0
      %v642 = vsel %vm628, %v616, 0
      %v645 = vsel %vm628, %v617, 0
      %v648 = vsel %vm628, %v618, 0
      %v651 = vsel %vm628, %v619, 0
      %653 = vmatprep.subr.bf16.mxu0 0
      %654 = vmatpush1.bf16.msra.mxu0 %v626
      %655 = vmatprep.subr.bf16.mxu0 0
      %656 = vmatpush1.bf16.msra.mxu0 0
      %657 = vmatprep.subr.bf16.mxu0 0
      %658 = vmatpush1.bf16.msra.mxu0 0
      %659 = vmatprep.subr.bf16.mxu0 0
      %660 = vmatpush1.bf16.msra.mxu0 0
      %661 = vmatprep.subr.bf16.mxu0 0
      %662 = vmatpush1.bf16.msra.mxu0 0
      %663 = vmatprep.subr.bf16.mxu0 0
      %664 = vmatpush1.bf16.msra.mxu0 0
      %665 = vmatprep.subr.bf16.mxu0 0
      %666 = vmatpush1.bf16.msra.mxu0 0
      %667 = vmatprep.subr.bf16.mxu0 0
      %668 = vmatpush1.bf16.msra.mxu0 0
      %669 = vmatprep.subr.bf16.mxu0 0
      %670 = vmatpush1.bf16.msra.mxu0 0
      %671 = vmatprep.subr.bf16.mxu0 0
      %672 = vmatpush1.bf16.msra.mxu0 0
      %673 = vmatprep.subr.bf16.mxu0 0
      %674 = vmatpush1.bf16.msra.mxu0 0
      %675 = vmatprep.subr.bf16.mxu0 0
      %676 = vmatpush1.bf16.msra.mxu0 0
      %677 = vmatprep.subr.bf16.mxu0 0
      %678 = vmatpush1.bf16.msra.mxu0 0
      %679 = vmatprep.subr.bf16.mxu0 0
      %680 = vmatpush1.bf16.msra.mxu0 0
      %681 = vmatprep.subr.bf16.mxu0 0
      %682 = vmatpush1.bf16.msra.mxu0 0
      %683 = vmatprep.subr.bf16.mxu0 0
      %684 = vmatpush1.bf16.msra.mxu0 0
      %685 = vmatprep.mubr.bf16.mxu0 0
      %686 = vmatmul.mubr.bf16.gmra.mrb[0].mxu0 %v630
      %v687 = vpop.f32.mrb[0].mxu0
      %v688 = vadd.f32 0.0, %v687
      %v689 = vpop.f32.mrb[0].mxu0
      %v690 = vpop.f32.mrb[0].mxu0
      %v691 = vadd.f32 0.0, %v690
      %v692 = vpop.f32.mrb[0].mxu0
      %693 = vmatprep.mubr.bf16.mxu0 0
      %694 = vmatmul.mubr.bf16.gmra.mrb[0].mxu0 %v633
      %v695 = vpop.f32.mrb[0].mxu0
      %v696 = vadd.f32 0.0, %v695
      %v697 = vpop.f32.mrb[0].mxu0
      %v698 = vpop.f32.mrb[0].mxu0
      %v699 = vadd.f32 0.0, %v698
      %v700 = vpop.f32.mrb[0].mxu0
      %701 = vmatprep.mubr.bf16.mxu0 0
      %702 = vmatmul.mubr.bf16.gmra.mrb[0].mxu0 %v636
      %v703 = vpop.f32.mrb[0].mxu0
      %v704 = vadd.f32 0.0, %v703
      %v705 = vpop.f32.mrb[0].mxu0
      %v706 = vpop.f32.mrb[0].mxu0
      %v707 = vadd.f32 0.0, %v706
      %v708 = vpop.f32.mrb[0].mxu0
      %709 = vmatprep.mubr.bf16.mxu0 0
      %710 = vmatmul.mubr.bf16.gmra.mrb[0].mxu0 %v639
      %v711 = vpop.f32.mrb[0].mxu0
      %v712 = vadd.f32 0.0, %v711
      %v713 = vpop.f32.mrb[0].mxu0
      %v714 = vpop.f32.mrb[0].mxu0
      %v715 = vadd.f32 0.0, %v714
      %v716 = vpop.f32.mrb[0].mxu0
      %717 = vmatprep.mubr.bf16.mxu0 0
      %718 = vmatmul.mubr.bf16.gmra.mrb[0].mxu0 %v642
      %v719 = vpop.f32.mrb[0].mxu0
      %v720 = vadd.f32 0.0, %v719
      %v721 = vpop.f32.mrb[0].mxu0
      %v722 = vpop.f32.mrb[0].mxu0
      %v723 = vadd.f32 0.0, %v722
      %v724 = vpop.f32.mrb[0].mxu0
      %725 = vmatprep.mubr.bf16.mxu0 0
      %726 = vmatmul.mubr.bf16.gmra.mrb[0].mxu0 %v645
      %v727 = vpop.f32.mrb[0].mxu0
      %v728 = vadd.f32 0.0, %v727
      %v729 = vpop.f32.mrb[0].mxu0
      %v730 = vpop.f32.mrb[0].mxu0
      %v731 = vadd.f32 0.0, %v730
      %v732 = vpop.f32.mrb[0].mxu0
      %733 = vmatprep.mubr.bf16.mxu0 0
      %734 = vmatmul.mubr.bf16.gmra.mrb[0].mxu0 %v648
      %v735 = vpop.f32.mrb[0].mxu0
      %v736 = vadd.f32 0.0, %v735
      %v737 = vpop.f32.mrb[0].mxu0
      %v738 = vpop.f32.mrb[0].mxu0
      %v739 = vadd.f32 0.0, %v738
      %v740 = vpop.f32.mrb[0].mxu0
      %741 = vmatprep.mubr.bf16.mxu0 0
      %742 = vmatmul.mubr.bf16.gmra.mrb[0].mxu0 %v651
      %v743 = vpop.f32.mrb[0].mxu0
      %v744 = vadd.f32 0.0, %v743
      %v745 = vpop.f32.mrb[0].mxu0
      %v746 = vpop.f32.mrb[0].mxu0
      %v747 = vpop.f32.mrb[0].mxu0
      %748 = vdwg.mxu0
      %v749 = vadd.f32 %v582, %v688
      %v750 = vadd.f32 %v583, %v691
      %v751 = vadd.f32 %v584, %v696
      %v752 = vadd.f32 %v585, %v699
      %v753 = vadd.f32 %v586, %v704
      %v754 = vadd.f32 %v587, %v707
      %v755 = vadd.f32 %v588, %v712
      %v756 = vadd.f32 %v589, %v715
      %v757 = vadd.f32 %v590, %v720
      %v758 = vadd.f32 %v591, %v723
      %v759 = vadd.f32 %v592, %v728
      %v760 = vadd.f32 %v593, %v731
      %v761 = vadd.f32 %v594, %v736
      %v762 = vadd.f32 %v595, %v739
      %v763 = vadd.f32 %v596, %v744
      %vm764 = vcmask 261120
      %v765 = vsel %vm764, %v749, 0.0
      %766 = vadd.xlane.f32.xlu0 %v765
      %v767 = vpop.xlane.xlu0 %766
      %v768 = vsel %vm764, %v750, 0.0
      %769 = vadd.xlane.f32.xlu0 %v768
      %v770 = vpop.xlane.xlu0 %769
      %v771 = vsel %vm764, %v751, 0.0
      %772 = vadd.xlane.f32.xlu0 %v771
      %v773 = vpop.xlane.xlu0 %772
      %v774 = vsel %vm764, %v752, 0.0
      %775 = vadd.xlane.f32.xlu0 %v774
      %v776 = vpop.xlane.xlu0 %775
      %v777 = vsel %vm764, %v753, 0.0
      %778 = vadd.xlane.f32.xlu0 %v777
      %v779 = vpop.xlane.xlu0 %778
      %v780 = vsel %vm764, %v754, 0.0
      %781 = vadd.xlane.f32.xlu0 %v780
      %v782 = vpop.xlane.xlu0 %781
      %v783 = vsel %vm764, %v755, 0.0
      %784 = vadd.xlane.f32.xlu0 %v783
      %v785 = vpop.xlane.xlu0 %784
      %v786 = vsel %vm764, %v756, 0.0
      %787 = vadd.xlane.f32.xlu0 %v786
      %v788 = vpop.xlane.xlu0 %787
      %v789 = vsel %vm764, %v757, 0.0
      %790 = vadd.xlane.f32.xlu0 %v789
      %v791 = vpop.xlane.xlu0 %790
      %v792 = vsel %vm764, %v758, 0.0
      %793 = vadd.xlane.f32.xlu0 %v792
      %v794 = vpop.xlane.xlu0 %793
      %v795 = vsel %vm764, %v759, 0.0
      %796 = vadd.xlane.f32.xlu0 %v795
      %v797 = vpop.xlane.xlu0 %796
      %v798 = vsel %vm764, %v760, 0.0
      %799 = vadd.xlane.f32.xlu0 %v798
      %v800 = vpop.xlane.xlu0 %799
      %v801 = vsel %vm764, %v761, 0.0
      %802 = vadd.xlane.f32.xlu0 %v801
      %v803 = vpop.xlane.xlu0 %802
      %v804 = vsel %vm764, %v762, 0.0
      %805 = vadd.xlane.f32.xlu0 %v804
      %v806 = vpop.xlane.xlu0 %805
      %v807 = vsel %vm764, %v763, 0.0
      %808 = vadd.xlane.f32.xlu0 %v807
      %v809 = vpop.xlane.xlu0 %808
      %v810 = vrcp.pop 32.0
      %v811 = vmul.f32 %v767, %v810
      %v812 = vmul.f32 %v770, %v810
      %v813 = vmul.f32 %v773, %v810
      %v814 = vmul.f32 %v776, %v810
      %v815 = vmul.f32 %v779, %v810
      %v816 = vmul.f32 %v782, %v810
      %v817 = vmul.f32 %v785, %v810
      %v818 = vmul.f32 %v788, %v810
      %v819 = vmul.f32 %v791, %v810
      %v820 = vmul.f32 %v794, %v810
      %v821 = vmul.f32 %v797, %v810
      %v822 = vmul.f32 %v800, %v810
      %v823 = vmul.f32 %v803, %v810
      %v824 = vmul.f32 %v806, %v810
      %v825 = vmul.f32 %v809, %v810
      %v826 = vsub.f32 %v749, %v811
      %v827 = vsub.f32 %v750, %v812
      %v828 = vsub.f32 %v751, %v813
      %v829 = vsub.f32 %v752, %v814
      %v830 = vsub.f32 %v753, %v815
      %v831 = vsub.f32 %v754, %v816
      %v832 = vsub.f32 %v755, %v817
      %v833 = vsub.f32 %v756, %v818
      %v834 = vsub.f32 %v757, %v819
      %v835 = vsub.f32 %v758, %v820
      %v836 = vsub.f32 %v759, %v821
      %v837 = vsub.f32 %v760, %v822
      %v838 = vsub.f32 %v761, %v823
      %v839 = vsub.f32 %v762, %v824
      %v840 = vsub.f32 %v763, %v825
      %v841 = vmul.f32 %v826, %v826
      %v842 = vmul.f32 %v827, %v827
      %v843 = vmul.f32 %v828, %v828
      %v844 = vmul.f32 %v829, %v829
      %v845 = vmul.f32 %v830, %v830
      %v846 = vmul.f32 %v831, %v831
      %v847 = vmul.f32 %v832, %v832
      %v848 = vmul.f32 %v833, %v833
      %v849 = vmul.f32 %v834, %v834
      %v850 = vmul.f32 %v835, %v835
      %v851 = vmul.f32 %v836, %v836
      %v852 = vmul.f32 %v837, %v837
      %v853 = vmul.f32 %v838, %v838
      %v854 = vmul.f32 %v839, %v839
      %v855 = vmul.f32 %v840, %v840
      %v856 = vsel %vm764, %v841, 0.0
      %857 = vadd.xlane.f32.xlu0 %v856
      %v858 = vpop.xlane.xlu0 %857
      %v859 = vsel %vm764, %v842, 0.0
      %860 = vadd.xlane.f32.xlu0 %v859
      %v861 = vpop.xlane.xlu0 %860
      %v862 = vsel %vm764, %v843, 0.0
      %863 = vadd.xlane.f32.xlu0 %v862
      %v864 = vpop.xlane.xlu0 %863
      %v865 = vsel %vm764, %v844, 0.0
      %866 = vadd.xlane.f32.xlu0 %v865
      %v867 = vpop.xlane.xlu0 %866
      %v868 = vsel %vm764, %v845, 0.0
      %869 = vadd.xlane.f32.xlu0 %v868
      %v870 = vpop.xlane.xlu0 %869
      %v871 = vsel %vm764, %v846, 0.0
      %872 = vadd.xlane.f32.xlu0 %v871
      %v873 = vpop.xlane.xlu0 %872
      %v874 = vsel %vm764, %v847, 0.0
      %875 = vadd.xlane.f32.xlu0 %v874
      %v876 = vpop.xlane.xlu0 %875
      %v877 = vsel %vm764, %v848, 0.0
      %878 = vadd.xlane.f32.xlu0 %v877
      %v879 = vpop.xlane.xlu0 %878
      %v880 = vsel %vm764, %v849, 0.0
      %881 = vadd.xlane.f32.xlu0 %v880
      %v882 = vpop.xlane.xlu0 %881
      %v883 = vsel %vm764, %v850, 0.0
      %884 = vadd.xlane.f32.xlu0 %v883
      %v885 = vpop.xlane.xlu0 %884
      %v886 = vsel %vm764, %v851, 0.0
      %887 = vadd.xlane.f32.xlu0 %v886
      %v888 = vpop.xlane.xlu0 %887
      %v889 = vsel %vm764, %v852, 0.0
      %890 = vadd.xlane.f32.xlu0 %v889
      %v891 = vpop.xlane.xlu0 %890
      %v892 = vsel %vm764, %v853, 0.0
      %893 = vadd.xlane.f32.xlu0 %v892
      %v894 = vpop.xlane.xlu0 %893
      %v895 = vsel %vm764, %v854, 0.0
      %896 = vadd.xlane.f32.xlu0 %v895
      %v897 = vpop.xlane.xlu0 %896
      %v898 = vsel %vm764, %v855, 0.0
      %899 = vadd.xlane.f32.xlu0 %v898
      %v900 = vpop.xlane.xlu0 %899
      %v901 = vmul.f32 %v858, %v810
      %v902 = vmul.f32 %v861, %v810
      %v903 = vmul.f32 %v864, %v810
      %v904 = vmul.f32 %v867, %v810
      %v905 = vmul.f32 %v870, %v810
      %v906 = vmul.f32 %v873, %v810
      %v907 = vmul.f32 %v876, %v810
      %v908 = vmul.f32 %v879, %v810
      %v909 = vmul.f32 %v882, %v810
      %v910 = vmul.f32 %v885, %v810
      %v911 = vmul.f32 %v888, %v810
      %v912 = vmul.f32 %v891, %v810
      %v913 = vmul.f32 %v894, %v810
      %v914 = vmul.f32 %v897, %v810
      %v915 = vmul.f32 %v900, %v810
      %v916 = vadd.f32 %v901, 1e-05
      %v917 = vadd.f32 %v902, 1e-05
      %v918 = vadd.f32 %v903, 1e-05
      %v919 = vadd.f32 %v904, 1e-05
      %v920 = vadd.f32 %v905, 1e-05
      %v921 = vadd.f32 %v906, 1e-05
      %v922 = vadd.f32 %v907, 1e-05
      %v923 = vadd.f32 %v908, 1e-05
      %v924 = vadd.f32 %v909, 1e-05
      %v925 = vadd.f32 %v910, 1e-05
      %v926 = vadd.f32 %v911, 1e-05
      %v927 = vadd.f32 %v912, 1e-05
      %v928 = vadd.f32 %v913, 1e-05
      %v929 = vadd.f32 %v914, 1e-05
      %v930 = vadd.f32 %v915, 1e-05
      %v931 = vrsqrt.pop %v916
      %v932 = vrsqrt.pop %v917
      %v933 = vrsqrt.pop %v918
      %v934 = vrsqrt.pop %v919
      %v935 = vrsqrt.pop %v920
      %v936 = vrsqrt.pop %v921
      %v937 = vrsqrt.pop %v922
      %v938 = vrsqrt.pop %v923
      %v939 = vrsqrt.pop %v924
      %v940 = vrsqrt.pop %v925
      %v941 = vrsqrt.pop %v926
      %v942 = vrsqrt.pop %v927
      %v943 = vrsqrt.pop %v928
      %v944 = vrsqrt.pop %v929
      %v945 = vrsqrt.pop %v930
      %v946 = vmul.f32 %v826, %v931
      %v947 = vmul.f32 %v827, %v932
      %v948 = vmul.f32 %v828, %v933
      %v949 = vmul.f32 %v829, %v934
      %v950 = vmul.f32 %v830, %v935
      %v951 = vmul.f32 %v831, %v936
      %v952 = vmul.f32 %v832, %v937
      %v953 = vmul.f32 %v833, %v938
      %v954 = vmul.f32 %v834, %v939
      %v955 = vmul.f32 %v835, %v940
      %v956 = vmul.f32 %v836, %v941
      %v957 = vmul.f32 %v837, %v942
      %v958 = vmul.f32 %v838, %v943
      %v959 = vmul.f32 %v839, %v944
      %v960 = vmul.f32 %v840, %v945
      %v961 = vlaneseq
      %v962 = vshrl.u32 %v961, 7
      %v963 = vsub.s32 1, %v962
      %v964 = vrot.slane %v251, %v963
      %v965 = vmul.f32 %v946, %v964
      %v966 = vmul.f32 %v947, %v964
      %v967 = vmul.f32 %v948, %v964
      %v968 = vmul.f32 %v949, %v964
      %v969 = vmul.f32 %v950, %v964
      %v970 = vmul.f32 %v951, %v964
      %v971 = vmul.f32 %v952, %v964
      %v972 = vmul.f32 %v953, %v964
      %v973 = vmul.f32 %v954, %v964
      %v974 = vmul.f32 %v955, %v964
      %v975 = vmul.f32 %v956, %v964
      %v976 = vmul.f32 %v957, %v964
      %v977 = vmul.f32 %v958, %v964
      %v978 = vmul.f32 %v959, %v964
      %v979 = vmul.f32 %v960, %v964
      %981 = vrot.lane.b32.xlu0 %v964, 96
      %v982 = vpop.permute.xlu0 %981
      %v984 = vadd.f32 %v965, %v982
      %v985 = vadd.f32 %v966, %v982
      %v986 = vadd.f32 %v967, %v982
      %v987 = vadd.f32 %v968, %v982
      %v988 = vadd.f32 %v969, %v982
      %v989 = vadd.f32 %v970, %v982
      %v990 = vadd.f32 %v971, %v982
      %v991 = vadd.f32 %v972, %v982
      %v992 = vadd.f32 %v973, %v982
      %v993 = vadd.f32 %v974, %v982
      %v994 = vadd.f32 %v975, %v982
      %v995 = vadd.f32 %v976, %v982
      %v996 = vadd.f32 %v977, %v982
      %v997 = vadd.f32 %v978, %v982
      %v998 = vadd.f32 %v979, %v982
      %999 = vst.msk [vmem:[%s248] sm:$0xff] %vm764, %v984
      %1000 = vst.msk [vmem:[%s248 + $0x8] sm:$0xff] %vm764, %v985
      %1001 = vst.msk [vmem:[%s248 + $0x10] sm:$0xff] %vm764, %v986
      %1002 = vst.msk [vmem:[%s248 + $0x18] sm:$0xff] %vm764, %v987
      %1003 = vst.msk [vmem:[%s248 + $0x20] sm:$0xff] %vm764, %v988
      %1004 = vst.msk [vmem:[%s248 + $0x28] sm:$0xff] %vm764, %v989
      %1005 = vst.msk [vmem:[%s248 + $0x30] sm:$0xff] %vm764, %v990
      %1006 = vst.msk [vmem:[%s248 + $0x38] sm:$0xff] %vm764, %v991
      %1007 = vst.msk [vmem:[%s248 + $0x40] sm:$0xff] %vm764, %v992
      %1008 = vst.msk [vmem:[%s248 + $0x48] sm:$0xff] %vm764, %v993
      %1009 = vst.msk [vmem:[%s248 + $0x50] sm:$0xff] %vm764, %v994
      %1010 = vst.msk [vmem:[%s248 + $0x58] sm:$0xff] %vm764, %v995
      %1011 = vst.msk [vmem:[%s248 + $0x60] sm:$0xff] %vm764, %v996
      %1012 = vst.msk [vmem:[%s248 + $0x68] sm:$0xff] %vm764, %v997
      %1013 = vst.msk [vmem:[%s248 + $0x70] sm:$0xff] %vm764, %v998
      %s1014 = smul.u32 15, %s16
      %p1015 = scmp.lt.s32.totalorder %s1014, 29
      %s1016 = scalar_select %p1015, %s1014, 29
      %s1017 = smul.addr %s1016, 8
      %s1018 = scalar_lea.vmem %s5, %s1017
      // Predicated region
      $region41: #{gate_add_norm_forward.1} parent=39 // pred_check
        %p1019 = pneg %p149
      $region42: #{gate_add_norm_forward.1} parent=39 // pred_check_branch
        %1021 = sbr.rel (%p1019) target = $region44
      $region43: #{gate_add_norm_forward.1} parent=39 // pred_region
        %s1022 = smul.u32 15, %s16
      $region44: #{gate_add_norm_forward.1} parent=39 // pred_fallthru
        _
    $region40: #{gate_add_norm_forward.1} parent=5 // pred_fallthru
      _
    %p1023 = scmp.le.s32.totalorder 2, %s11
    // Predicated region
    $region45: #{gate_add_norm_forward.1} parent=5 // pred_check
      %p1024 = pneg %p1023
    $region46: #{gate_add_norm_forward.1} parent=5 // pred_check_branch
      %1026 = sbr.rel (%p1024) target = $region48
    $region47: #{gate_add_norm_forward.1} parent=5 // pred_region
      %s1027 = ssub.s32 %s11, 2
      // Predicated region
      $region49: #{gate_add_norm_forward.1} parent=47 // pred_check
        %p1028 = pneg %p155
      $region50: #{gate_add_norm_forward.1} parent=47 // pred_check_branch
        %1030 = sbr.rel (%p1028) target = $region52
      $region51: #{gate_add_norm_forward.1} parent=47 // pred_region
        %s1031 = smul.u32 15, %s17
        %p1032 = scmp.lt.s32.totalorder %s1031, 29
        %s1033 = scalar_select %p1032, %s1031, 29
        %s1034 = smul.addr %s1033, 8
        %s1035 = scalar_lea.vmem %s5, %s1034
      $region52: #{gate_add_norm_forward.1} parent=47 // pred_fallthru
        _
    $region48: #{gate_add_norm_forward.1} parent=5 // pred_fallthru
      _
  $region6: #{gate_add_norm_forward.1} parent=0 // loop_footer
    %s15 = sadd.s32 1, %s11
  $region7: #{gate_add_norm_forward.1} parent=0 // loop_footer_branch
    %10 = sbr.rel target = $region3
  $region8: #{gate_add_norm_forward.1} parent=0 // loop_exit
    _

</llo_original>
